<compile_context>
chip_gen: v7x
topology: tpu7x:2x2x1
jax: 0.10.0
libtpu: 0.0.40
codegen_flags: <defaults>
</compile_context>

<pallas_src>
import functools
import math

import jax
import jax.numpy as jnp
from jax.experimental import pallas as pl
from jax.experimental.pallas import tpu as pltpu


_VMEM_LIMIT_BYTES = 48 * 1024 * 1024   # safe on v5e/v6e (128 MiB) and v7x (64 MiB)
_TILE_VMEM_BUDGET = 24 * 1024 * 1024   # budget for 3 inputs x 2 pipeline buffers
_MAX_TILE_ROWS = 8192                  # amortizes ~0.35 us/step even at 3.2 TB/s


def _round_up(n, m):
    return ((n + m - 1) // m) * m


def _round_down(n, m):
    return max((n // m) * m, m)


def _sublane_multiple(dtype):
    itemsize = jnp.dtype(dtype).itemsize
    return max(8, 32 // itemsize)      # f32 -> 8, bf16 -> 16, int8/fp8 -> 32


# --------------------------------------------------------------------------
# 2-D path: x is (B, D), torch.norm(..., dim=1) reduces over the lane axis.
# --------------------------------------------------------------------------
def _triplet_2d_kernel(x_ref, xp_ref, xm_ref, out_ref, *, total_rows, ragged):
    x = x_ref[...].astype(jnp.float32)
    xp = xp_ref[...].astype(jnp.float32)
    xm = xm_ref[...].astype(jnp.float32)

    dp = x - xp
    dm = x - xm
    d_plus = jnp.sqrt(jnp.sum(dp * dp, axis=1, keepdims=True))    # (tb, 1)
    d_minus = jnp.sqrt(jnp.sum(dm * dm, axis=1, keepdims=True))   # (tb, 1)

    # d_plus_frac = sigmoid(d+ - d-);  l = 2 * sigmoid(d+ - d-)^2
    s = d_plus - d_minus
    sig = 1.0 / (1.0 + jnp.exp(-s))
    l = 2.0 * sig * sig                                           # (tb, 1)

    if ragged:  # static: only the non-divisible-B case pays for the mask
        i = pl.program_id(0)
        tb = x_ref.shape[0]
        row = i * tb + jax.lax.broadcasted_iota(jnp.int32, (tb, 1), 0)
        l = jnp.where(row < total_rows, l, 0.0)

    out_ref[...] = jnp.sum(l, axis=0, keepdims=True).reshape(1, 1, 1)


def _triplet_loss_2d(x, x_plus, x_minus, *, block_rows=None):
    B, D = x.shape
    itemsize = jnp.dtype(x.dtype).itemsize
    sub = _sublane_multiple(x.dtype)

    # D-aware tile: the largest tb whose 3 x 2 double-buffered tiles fit the budget.
    max_tb = max(_TILE_VMEM_BUDGET // (3 * 2 * D * itemsize), sub)
    max_tb = min(max_tb, _MAX_TILE_ROWS)
    if block_rows is not None:
        max_tb = min(max_tb, max(int(block_rows), sub))
    # TODO(synk): for D so large that even tb=sublane_multiple overflows VMEM,
    # add an inner "arbitrary" grid axis over D with a (tb, 1) running scratch.

    if B <= max_tb:
        tb = B                         # single block == full dim (always legal)
    else:
        tb = _round_down(max_tb, sub)
    n_tiles = pl.cdiv(B, tb)
    ragged = (B % tb) != 0

    kernel = functools.partial(_triplet_2d_kernel, total_rows=B, ragged=ragged)

    cost = pl.CostEstimate(
        flops=6 * B * D,
        transcendentals=3 * B,
        bytes_accessed=3 * B * D * itemsize + 4 * n_tiles,
    )

    partials = pl.pallas_call(
        kernel,
        out_shape=jax.ShapeDtypeStruct((n_tiles, 1, 1), jnp.float32),
        grid=(n_tiles,),
        in_specs=[pl.BlockSpec((tb, D), lambda i: (i, 0)) for _ in range(3)],
        out_specs=pl.BlockSpec((1, 1, 1), lambda i: (i, 0, 0)),
        compiler_params=pltpu.CompilerParams(
            dimension_semantics=("parallel",),      # per-tile partial sums -> megacore OK
            vmem_limit_bytes=_VMEM_LIMIT_BYTES,
        ),
        cost_estimate=cost,
    )(x, x_plus, x_minus)

    return jnp.sum(partials) / B


# --------------------------------------------------------------------------
# N-D path: x is (B, C, *spatial); torch.norm(..., dim=1) reduces over C.
# No wrapper transpose: a free contiguous reshape to (B, C, S) and an
# in-kernel reduction over the channel (sublane) axis.
# --------------------------------------------------------------------------
def _triplet_nd_kernel(x_ref, xp_ref, xm_ref, out_ref, *,
                       total_b, total_s, ragged_b, ragged_s):
    x = x_ref[...].astype(jnp.float32)     # (tb, C, ts)
    xp = xp_ref[...].astype(jnp.float32)
    xm = xm_ref[...].astype(jnp.float32)

    dp = x - xp
    dm = x - xm
    ssp = jnp.sum(dp * dp, axis=1)         # (tb, ts): reduce over channels
    ssm = jnp.sum(dm * dm, axis=1)

    s = jnp.sqrt(ssp) - jnp.sqrt(ssm)
    sig = 1.0 / (1.0 + jnp.exp(-s))
    l = 2.0 * sig * sig                    # (tb, ts)

    tb = x_ref.shape[0]
    ts = x_ref.shape[2]
    if ragged_b:
        i = pl.program_id(0)
        row = i * tb + jax.lax.broadcasted_iota(jnp.int32, (tb, ts), 0)
        l = jnp.where(row < total_b, l, 0.0)
    if ragged_s:
        j = pl.program_id(1)
        col = j * ts + jax.lax.broadcasted_iota(jnp.int32, (tb, ts), 1)
        l = jnp.where(col < total_s, l, 0.0)

    out_ref[...] = jnp.sum(l, keepdims=True).reshape(1, 1, 1, 1)


def _triplet_loss_nd(x, x_plus, x_minus):
    B, C = x.shape[0], x.shape[1]
    S = math.prod(x.shape[2:])
    itemsize = jnp.dtype(x.dtype).itemsize

    x3 = x.reshape(B, C, S)                 # contiguous reshape: no HBM transpose
    xp3 = x_plus.reshape(B, C, S)
    xm3 = x_minus.reshape(B, C, S)

    # Lane tile over flattened spatial axis: multiple of 128 or the full S.
    per_col_bytes = 3 * 2 * C * itemsize
    if S * per_col_bytes <= _TILE_VMEM_BUDGET:
        ts = S
    else:
        ts = max(_round_down(_TILE_VMEM_BUDGET // per_col_bytes, 128), 128)
        # TODO(synk): for extreme C where even ts=128 overflows VMEM, add an
        # inner "arbitrary" grid axis over C with a (tb, 1, ts) running scratch.
    max_tb = max(_TILE_VMEM_BUDGET // (3 * 2 * C * ts * itemsize), 1)
    tb = min(max_tb, B)

    n_b = pl.cdiv(B, tb)
    n_s = pl.cdiv(S, ts)
    ragged_b = (B % tb) != 0
    ragged_s = (S % ts) != 0

    kernel = functools.partial(
        _triplet_nd_kernel, total_b=B, total_s=S,
        ragged_b=ragged_b, ragged_s=ragged_s)

    cost = pl.CostEstimate(
        flops=6 * B * C * S,
        transcendentals=3 * B * S,
        bytes_accessed=3 * B * C * S * itemsize + 4 * n_b * n_s,
    )

    partials = pl.pallas_call(
        kernel,
        out_shape=jax.ShapeDtypeStruct((n_b, n_s, 1, 1), jnp.float32),
        grid=(n_b, n_s),
        in_specs=[pl.BlockSpec((tb, C, ts), lambda i, j: (i, 0, j))
                  for _ in range(3)],
        out_specs=pl.BlockSpec((1, 1, 1, 1), lambda i, j: (i, j, 0, 0)),
        compiler_params=pltpu.CompilerParams(
            dimension_semantics=("parallel", "parallel"),
            vmem_limit_bytes=_VMEM_LIMIT_BYTES,
        ),
        cost_estimate=cost,
    )(x3, xp3, xm3)

    return jnp.sum(partials) / (B * S)


# --------------------------------------------------------------------------
# Public entry point: matches Triplet_loss.forward semantics.
# --------------------------------------------------------------------------
def triplet_loss(x, x_plus, x_minus, *, block_rows=None):
    assert x.shape == x_plus.shape == x_minus.shape
    assert x.ndim >= 2, "torch.norm(dim=1) needs at least 2 dims"
    if x.ndim == 2:
        return _triplet_loss_2d(x, x_plus, x_minus, block_rows=block_rows)
    return _triplet_loss_nd(x, x_plus, x_minus)


def _reference(x, x_plus, x_minus):
    # Literal (two-exp) form of the PyTorch module, in f32.
    x = x.astype(jnp.float32)
    x_plus = x_plus.astype(jnp.float32)
    x_minus = x_minus.astype(jnp.float32)
    d_p = jnp.sqrt(jnp.sum((x - x_plus) ** 2, axis=1))
    d_m = jnp.sqrt(jnp.sum((x - x_minus) ** 2, axis=1))
    e_p, e_m = jnp.exp(d_p), jnp.exp(d_m)
    dp = e_p / (e_p + e_m)
    dm = e_m / (e_p + e_m)
    return jnp.mean(dp ** 2 + (dm - 1.0) ** 2)


if __name__ == "__main__":
    key = jax.random.PRNGKey(0)
    k1, k2, k3, k4, k5, k6 = jax.random.split(key, 6)

    # --- 2-D embeddings, default (D-aware) tile: single block covering B. ---
    B, D = 300, 128
    x = jax.random.normal(k1, (B, D), dtype=jnp.float32)
    x_plus = x + 0.1 * jax.random.normal(k2, (B, D), dtype=jnp.float32)
    x_minus = jax.random.normal(k3, (B, D), dtype=jnp.float32)

    loss = jax.block_until_ready(triplet_loss(x, x_plus, x_minus))
    ref = _reference(x, x_plus, x_minus)
    assert jnp.allclose(loss, ref, rtol=1e-5, atol=1e-5), (loss, ref)

    # --- Same inputs, forced small tile: multi-tile + ragged-mask path. ---
    loss_r = jax.block_until_ready(triplet_loss(x, x_plus, x_minus, block_rows=128))
    assert jnp.allclose(loss_r, ref, rtol=1e-5, atol=1e-5), (loss_r, ref)

    # --- 4-D feature maps (B, C, H, W): norm over dim=1, N-D kernel path. ---
    B4, C4, H4, W4 = 2, 4, 16, 16
    y = jax.random.normal(k4, (B4, C4, H4, W4), dtype=jnp.float32)
    y_plus = y + 0.1 * jax.random.normal(k5, (B4, C4, H4, W4), dtype=jnp.float32)
    y_minus = jax.random.normal(k6, (B4, C4, H4, W4), dtype=jnp.float32)

    loss4 = jax.block_until_ready(triplet_loss(y, y_plus, y_minus))
    ref4 = _reference(y, y_plus, y_minus)
    assert jnp.allclose(loss4, ref4, rtol=1e-5, atol=1e-5), (loss4, ref4)

    print("KERNEL_OK")
</pallas_src>

<mosaic_0001>
module attributes {stable_mosaic.version = 11 : i64} {
  func.func @_triplet_2d_kernel(%arg0: i32, %arg1: memref<300x128xf32, #tpu.memory_space<vmem>>, %arg2: memref<300x128xf32, #tpu.memory_space<vmem>>, %arg3: memref<300x128xf32, #tpu.memory_space<vmem>>, %arg4: memref<1x1x1xf32, #tpu.memory_space<vmem>>) attributes {dimension_semantics = [#tpu.dimension_semantics<parallel>], iteration_bounds = array<i64: 1>, scalar_prefetch = 0 : i64, scratch_operands = 0 : i64, tpu.core_type = #tpu.core_type<tc>, window_params = [{transform_indices = @transform_0, window_bounds = array<i64: 300, 128>}, {transform_indices = @transform_1, window_bounds = array<i64: 300, 128>}, {transform_indices = @transform_2, window_bounds = array<i64: 300, 128>}, {transform_indices = @transform_3, window_bounds = array<i64: 1, 1, 1>}]} {
    %c0 = arith.constant 0 : index
    %c0_0 = arith.constant 0 : index
    %0 = vector.load %arg1[%c0, %c0_0] : memref<300x128xf32, #tpu.memory_space<vmem>>, vector<300x128xf32>
    %c0_1 = arith.constant 0 : index
    %c0_2 = arith.constant 0 : index
    %1 = vector.load %arg2[%c0_1, %c0_2] : memref<300x128xf32, #tpu.memory_space<vmem>>, vector<300x128xf32>
    %c0_3 = arith.constant 0 : index
    %c0_4 = arith.constant 0 : index
    %2 = vector.load %arg3[%c0_3, %c0_4] : memref<300x128xf32, #tpu.memory_space<vmem>>, vector<300x128xf32>
    %3 = arith.subf %0, %1 : vector<300x128xf32>
    %4 = arith.subf %0, %2 : vector<300x128xf32>
    %5 = arith.mulf %3, %3 : vector<300x128xf32>
    %cst = arith.constant dense<0.000000e+00> : vector<300xf32>
    %6 = vector.multi_reduction <add>, %5, %cst [1] : vector<300x128xf32> to vector<300xf32>
    %7 = vector.shape_cast %6 : vector<300xf32> to vector<300x1xf32>
    %8 = math.sqrt %7 : vector<300x1xf32>
    %9 = arith.mulf %4, %4 : vector<300x128xf32>
    %cst_5 = arith.constant dense<0.000000e+00> : vector<300xf32>
    %10 = vector.multi_reduction <add>, %9, %cst_5 [1] : vector<300x128xf32> to vector<300xf32>
    %11 = vector.shape_cast %10 : vector<300xf32> to vector<300x1xf32>
    %12 = math.sqrt %11 : vector<300x1xf32>
    %13 = arith.subf %8, %12 : vector<300x1xf32>
    %cst_6 = arith.constant 0.000000e+00 : f32
    %14 = vector.broadcast %cst_6 : f32 to vector<300x1xf32>
    %15 = arith.subf %14, %13 : vector<300x1xf32>
    %16 = math.exp %15 : vector<300x1xf32>
    %cst_7 = arith.constant 1.000000e+00 : f32
    %17 = vector.broadcast %cst_7 : f32 to vector<300x1xf32>
    %18 = arith.addf %17, %16 : vector<300x1xf32>
    %cst_8 = arith.constant 1.000000e+00 : f32
    %19 = vector.broadcast %cst_8 : f32 to vector<300x1xf32>
    %20 = arith.divf %19, %18 : vector<300x1xf32>
    %cst_9 = arith.constant 2.000000e+00 : f32
    %21 = vector.broadcast %cst_9 : f32 to vector<300x1xf32>
    %22 = arith.mulf %21, %20 : vector<300x1xf32>
    %23 = arith.mulf %22, %20 : vector<300x1xf32>
    %cst_10 = arith.constant dense<0.000000e+00> : vector<1xf32>
    %24 = vector.multi_reduction <add>, %23, %cst_10 [0] : vector<300x1xf32> to vector<1xf32>
    %25 = vector.shape_cast %24 : vector<1xf32> to vector<1x1xf32>
    %26 = vector.shape_cast %25 : vector<1x1xf32> to vector<1x1x1xf32>
    %c0_11 = arith.constant 0 : index
    %c0_12 = arith.constant 0 : index
    %c0_13 = arith.constant 0 : index
    %27 = vector.load %arg4[%c0_11, %c0_12, %c0_13] : memref<1x1x1xf32, #tpu.memory_space<vmem>>, vector<1x1x1xf32>
    tpu.vector_store %arg4[%c0_11, %c0_12, %c0_13], %26 {strides = array<i32>} : memref<1x1x1xf32, #tpu.memory_space<vmem>>, vector<1x1x1xf32>,
    return
  }
  func.func @transform_0(%arg0: i32) -> (i32, i32) {
    %c0_i32 = arith.constant 0 : i32
    %c0_i32_0 = arith.constant 0 : i32
    return %arg0, %c0_i32 : i32, i32
  }
  func.func @transform_1(%arg0: i32) -> (i32, i32) {
    %c0_i32 = arith.constant 0 : i32
    %c0_i32_0 = arith.constant 0 : i32
    return %arg0, %c0_i32 : i32, i32
  }
  func.func @transform_2(%arg0: i32) -> (i32, i32) {
    %c0_i32 = arith.constant 0 : i32
    %c0_i32_0 = arith.constant 0 : i32
    return %arg0, %c0_i32 : i32, i32
  }
  func.func @transform_3(%arg0: i32) -> (i32, i32, i32) {
    %c0_i32 = arith.constant 0 : i32
    %c0_i32_0 = arith.constant 0 : i32
    %c0_i32_1 = arith.constant 0 : i32
    return %arg0, %c0_i32, %c0_i32_0 : i32, i32, i32
  }
}

</mosaic_0001>

<llo_original>
// kernel: tpu_custom_call.1
$region0: #{tpu_custom_call.1}
  #allocation0 [shape = 'u32[]', space=smem, size = 0x4, offset = 0x4, fixed_abs, tag = 'smem constant byte address 0x4 - core index']
  #allocation1 [shape = 'u32[144,128]{1,0:T(1,128)}', space=vmem, size = 0x12000, scoped, tag = 'internal scratch']
  %s0 = inlined_call_operand.hbm [shape: f32[300,128], index: 0, kind: input, shape index: {}]
  %s1 = inlined_call_operand.hbm [shape: f32[300,128], index: 1, kind: input, shape index: {}]
  %s2 = inlined_call_operand.hbm [shape: f32[300,128], index: 2, kind: input, shape index: {}]
  %s3 = inlined_call_operand.hbm [shape: f32[1,1,1], index: 3, kind: output, shape index: {}]
  %s4 = sld [smem:[#allocation0]]
  $region34: #{tpu_custom_call.1} parent=0
    _
  %s6 = ssub.s32 1, %s4
  %s7 = scalar_select 0, %s6, %s4
  $region1: #{tpu_custom_call.1} parent=0
    #allocation2 [shape = 'u8[155648]{0}', space=vmem, size = 0x26000, scoped, tag = 'input window, operand 0, single buffered']
    #allocation3 [shape = 's32[1]{0}', space=sflag, size = 0x4, scoped, tag = 'scoped memory for tpu_custom_call.1']
    #allocation4 [shape = 's32[1]{0}', space=sflag, size = 0x4, scoped, tag = 'scoped memory for tpu_custom_call.1']
    #allocation5 [shape = 'u8[155648]{0}', space=vmem, size = 0x26000, scoped, tag = 'input window, operand 1, single buffered']
    #allocation6 [shape = 's32[1]{0}', space=sflag, size = 0x4, scoped, tag = 'scoped memory for tpu_custom_call.1']
    #allocation7 [shape = 'u8[155648]{0}', space=vmem, size = 0x26000, scoped, tag = 'input window, operand 2, single buffered']
    #allocation8 [shape = 'u8[512]{0}', space=vmem, size = 0x400, scoped, tag = 'output window, operand 0, single buffered']
    %8 = vsyncpa [#allocation3], 0
    %9 = vsyncpa [#allocation6], 0
    %10 = vsyncpa [#allocation4], 0
    // Predicated region
    $region2: #{tpu_custom_call.1} parent=1 // pred_check
      _
    $region3: #{tpu_custom_call.1} parent=1 // pred_check_branch
      %12 = sbr.rel (0) target = $region5
    $region4: #{tpu_custom_call.1} parent=1 // pred_region
      %s14 = ssub.s32 4864, 4864
      %15 = vsyncadd [#allocation3], %s14
      %s16 = sshll.u32 [#allocation2], 4
      %s17 = int_to_ptr.vmem [resolvable:$true] %s16
      %22 = dma.hbm_to_vmem [thread:$0]  %s0, 4864, %s17, [#allocation3], 128, 128, 8
    $region5: #{tpu_custom_call.1} parent=1 // pred_fallthru
      _
    // Predicated region
    $region6: #{tpu_custom_call.1} parent=1 // pred_check
      _
    $region7: #{tpu_custom_call.1} parent=1 // pred_check_branch
      %24 = sbr.rel (0) target = $region9
    $region8: #{tpu_custom_call.1} parent=1 // pred_region
      %s26 = ssub.s32 4864, 4864
      %27 = vsyncadd [#allocation6], %s26
      %s28 = sshll.u32 [#allocation5], 4
      %s29 = int_to_ptr.vmem [resolvable:$true] %s28
      %34 = dma.hbm_to_vmem [thread:$0]  %s1, 4864, %s29, [#allocation6], 128, 128, 8
    $region9: #{tpu_custom_call.1} parent=1 // pred_fallthru
      _
    // Predicated region
    $region10: #{tpu_custom_call.1} parent=1 // pred_check
      _
    $region11: #{tpu_custom_call.1} parent=1 // pred_check_branch
      %36 = sbr.rel (0) target = $region13
    $region12: #{tpu_custom_call.1} parent=1 // pred_region
      %s38 = ssub.s32 4864, 4864
      %39 = vsyncadd [#allocation6], %s38
      %s40 = sshll.u32 [#allocation7], 4
      %s41 = int_to_ptr.vmem [resolvable:$true] %s40
      %46 = dma.hbm_to_vmem [thread:$0]  %s2, 4864, %s41, [#allocation6], 128, 128, 8
    $region13: #{tpu_custom_call.1} parent=1 // pred_fallthru
      _
    // Predicated region
    $region14: #{tpu_custom_call.1} parent=1 // pred_check
      _
    $region15: #{tpu_custom_call.1} parent=1 // pred_check_branch
      %48 = sbr.rel (0) target = $region17
    $region16: #{tpu_custom_call.1} parent=1 // pred_region
      %49 = dma.done [#allocation3], 4864
    $region17: #{tpu_custom_call.1} parent=1 // pred_fallthru
      _
    // Predicated region
    $region18: #{tpu_custom_call.1} parent=1 // pred_check
      _
    $region19: #{tpu_custom_call.1} parent=1 // pred_check_branch
      %51 = sbr.rel (0) target = $region21
    $region20: #{tpu_custom_call.1} parent=1 // pred_region
      %52 = dma.done [#allocation6], 4864
    $region21: #{tpu_custom_call.1} parent=1 // pred_fallthru
      _
    // Predicated region
    $region22: #{tpu_custom_call.1} parent=1 // pred_check
      _
    $region23: #{tpu_custom_call.1} parent=1 // pred_check_branch
      %54 = sbr.rel (0) target = $region25
    $region24: #{tpu_custom_call.1} parent=1 // pred_region
      %55 = dma.done [#allocation6], 4864
    $region25: #{tpu_custom_call.1} parent=1 // pred_fallthru
      _
    %v56 = vld [vmem:[#allocation2] sm:$0xff]
    %v57 = vld [vmem:[#allocation2 + $0x8] sm:$0xff]
    %v58 = vld [vmem:[#allocation2 + $0x10] sm:$0xff]
    %v59 = vld [vmem:[#allocation2 + $0x18] sm:$0xff]
    %v60 = vld [vmem:[#allocation2 + $0x20] sm:$0xff]
    %v61 = vld [vmem:[#allocation2 + $0x28] sm:$0xff]
    %v62 = vld [vmem:[#allocation2 + $0x30] sm:$0xff]
    %v63 = vld [vmem:[#allocation2 + $0x38] sm:$0xff]
    %v64 = vld [vmem:[#allocation2 + $0x40] sm:$0xff]
    %v65 = vld [vmem:[#allocation2 + $0x48] sm:$0xff]
    %v66 = vld [vmem:[#allocation2 + $0x50] sm:$0xff]
    %v67 = vld [vmem:[#allocation2 + $0x58] sm:$0xff]
    %v68 = vld [vmem:[#allocation2 + $0x60] sm:$0xff]
    %v69 = vld [vmem:[#allocation2 + $0x68] sm:$0xff]
    %v70 = vld [vmem:[#allocation2 + $0x70] sm:$0xff]
    %v71 = vld [vmem:[#allocation2 + $0x78] sm:$0xff]
    %v72 = vld [vmem:[#allocation2 + $0x80] sm:$0xff]
    %v73 = vld [vmem:[#allocation2 + $0x88] sm:$0xff]
    %v74 = vld [vmem:[#allocation2 + $0x90] sm:$0xff]
    %v75 = vld [vmem:[#allocation2 + $0x98] sm:$0xff]
    %v76 = vld [vmem:[#allocation2 + $0xa0] sm:$0xff]
    %v77 = vld [vmem:[#allocation2 + $0xa8] sm:$0xff]
    %v78 = vld [vmem:[#allocation2 + $0xb0] sm:$0xff]
    %v79 = vld [vmem:[#allocation2 + $0xb8] sm:$0xff]
    %v80 = vld [vmem:[#allocation2 + $0xc0] sm:$0xff]
    %v81 = vld [vmem:[#allocation2 + $0xc8] sm:$0xff]
    %v82 = vld [vmem:[#allocation2 + $0xd0] sm:$0xff]
    %v83 = vld [vmem:[#allocation2 + $0xd8] sm:$0xff]
    %v84 = vld [vmem:[#allocation2 + $0xe0] sm:$0xff]
    %v85 = vld [vmem:[#allocation2 + $0xe8] sm:$0xff]
    %v86 = vld [vmem:[#allocation2 + $0xf0] sm:$0xff]
    %v87 = vld [vmem:[#allocation2 + $0xf8] sm:$0xff]
    %v88 = vld [vmem:[#allocation2 + $0x100] sm:$0xff]
    %v89 = vld [vmem:[#allocation2 + $0x108] sm:$0xff]
    %v90 = vld [vmem:[#allocation2 + $0x110] sm:$0xff]
    %v91 = vld [vmem:[#allocation2 + $0x118] sm:$0xff]
    %v92 = vld [vmem:[#allocation2 + $0x120] sm:$0xff]
    %v93 = vld [vmem:[#allocation2 + $0x128] sm:$0xf]
    %v94 = vld [vmem:[#allocation5] sm:$0xff]
    %v95 = vld [vmem:[#allocation5 + $0x8] sm:$0xff]
    %v96 = vld [vmem:[#allocation5 + $0x10] sm:$0xff]
    %v97 = vld [vmem:[#allocation5 + $0x18] sm:$0xff]
    %v98 = vld [vmem:[#allocation5 + $0x20] sm:$0xff]
    %v99 = vld [vmem:[#allocation5 + $0x28] sm:$0xff]
    %v100 = vld [vmem:[#allocation5 + $0x30] sm:$0xff]
    %v101 = vld [vmem:[#allocation5 + $0x38] sm:$0xff]
    %v102 = vld [vmem:[#allocation5 + $0x40] sm:$0xff]
    %v103 = vld [vmem:[#allocation5 + $0x48] sm:$0xff]
    %v104 = vld [vmem:[#allocation5 + $0x50] sm:$0xff]
    %v105 = vld [vmem:[#allocation5 + $0x58] sm:$0xff]
    %v106 = vld [vmem:[#allocation5 + $0x60] sm:$0xff]
    %v107 = vld [vmem:[#allocation5 + $0x68] sm:$0xff]
    %v108 = vld [vmem:[#allocation5 + $0x70] sm:$0xff]
    %v109 = vld [vmem:[#allocation5 + $0x78] sm:$0xff]
    %v110 = vld [vmem:[#allocation5 + $0x80] sm:$0xff]
    %v111 = vld [vmem:[#allocation5 + $0x88] sm:$0xff]
    %v112 = vld [vmem:[#allocation5 + $0x90] sm:$0xff]
    %v113 = vld [vmem:[#allocation5 + $0x98] sm:$0xff]
    %v114 = vld [vmem:[#allocation5 + $0xa0] sm:$0xff]
    %v115 = vld [vmem:[#allocation5 + $0xa8] sm:$0xff]
    %v116 = vld [vmem:[#allocation5 + $0xb0] sm:$0xff]
    %v117 = vld [vmem:[#allocation5 + $0xb8] sm:$0xff]
    %v118 = vld [vmem:[#allocation5 + $0xc0] sm:$0xff]
    %v119 = vld [vmem:[#allocation5 + $0xc8] sm:$0xff]
    %v120 = vld [vmem:[#allocation5 + $0xd0] sm:$0xff]
    %v121 = vld [vmem:[#allocation5 + $0xd8] sm:$0xff]
    %v122 = vld [vmem:[#allocation5 + $0xe0] sm:$0xff]
    %v123 = vld [vmem:[#allocation5 + $0xe8] sm:$0xff]
    %v124 = vld [vmem:[#allocation5 + $0xf0] sm:$0xff]
    %v125 = vld [vmem:[#allocation5 + $0xf8] sm:$0xff]
    %v126 = vld [vmem:[#allocation5 + $0x100] sm:$0xff]
    %v127 = vld [vmem:[#allocation5 + $0x108] sm:$0xff]
    %v128 = vld [vmem:[#allocation5 + $0x110] sm:$0xff]
    %v129 = vld [vmem:[#allocation5 + $0x118] sm:$0xff]
    %v130 = vld [vmem:[#allocation5 + $0x120] sm:$0xff]
    %v131 = vld [vmem:[#allocation5 + $0x128] sm:$0xf]
    %v132 = vld [vmem:[#allocation7] sm:$0xff]
    %v133 = vld [vmem:[#allocation7 + $0x8] sm:$0xff]
    %v134 = vld [vmem:[#allocation7 + $0x10] sm:$0xff]
    %v135 = vld [vmem:[#allocation7 + $0x18] sm:$0xff]
    %v136 = vld [vmem:[#allocation7 + $0x20] sm:$0xff]
    %v137 = vld [vmem:[#allocation7 + $0x28] sm:$0xff]
    %v138 = vld [vmem:[#allocation7 + $0x30] sm:$0xff]
    %v139 = vld [vmem:[#allocation7 + $0x38] sm:$0xff]
    %v140 = vld [vmem:[#allocation7 + $0x40] sm:$0xff]
    %v141 = vld [vmem:[#allocation7 + $0x48] sm:$0xff]
    %v142 = vld [vmem:[#allocation7 + $0x50] sm:$0xff]
    %v143 = vld [vmem:[#allocation7 + $0x58] sm:$0xff]
    %v144 = vld [vmem:[#allocation7 + $0x60] sm:$0xff]
    %v145 = vld [vmem:[#allocation7 + $0x68] sm:$0xff]
    %v146 = vld [vmem:[#allocation7 + $0x70] sm:$0xff]
    %v147 = vld [vmem:[#allocation7 + $0x78] sm:$0xff]
    %v148 = vld [vmem:[#allocation7 + $0x80] sm:$0xff]
    %v149 = vld [vmem:[#allocation7 + $0x88] sm:$0xff]
    %v150 = vld [vmem:[#allocation7 + $0x90] sm:$0xff]
    %v151 = vld [vmem:[#allocation7 + $0x98] sm:$0xff]
    %v152 = vld [vmem:[#allocation7 + $0xa0] sm:$0xff]
    %v153 = vld [vmem:[#allocation7 + $0xa8] sm:$0xff]
    %v154 = vld [vmem:[#allocation7 + $0xb0] sm:$0xff]
    %v155 = vld [vmem:[#allocation7 + $0xb8] sm:$0xff]
    %v156 = vld [vmem:[#allocation7 + $0xc0] sm:$0xff]
    %v157 = vld [vmem:[#allocation7 + $0xc8] sm:$0xff]
    %v158 = vld [vmem:[#allocation7 + $0xd0] sm:$0xff]
    %v159 = vld [vmem:[#allocation7 + $0xd8] sm:$0xff]
    %v160 = vld [vmem:[#allocation7 + $0xe0] sm:$0xff]
    %v161 = vld [vmem:[#allocation7 + $0xe8] sm:$0xff]
    %v162 = vld [vmem:[#allocation7 + $0xf0] sm:$0xff]
    %v163 = vld [vmem:[#allocation7 + $0xf8] sm:$0xff]
    %v164 = vld [vmem:[#allocation7 + $0x100] sm:$0xff]
    %v165 = vld [vmem:[#allocation7 + $0x108] sm:$0xff]
    %v166 = vld [vmem:[#allocation7 + $0x110] sm:$0xff]
    %v167 = vld [vmem:[#allocation7 + $0x118] sm:$0xff]
    %v168 = vld [vmem:[#allocation7 + $0x120] sm:$0xff]
    %v169 = vld [vmem:[#allocation7 + $0x128] sm:$0xf]
    %v170 = vsub.f32 %v56, %v94
    %v171 = vsub.f32 %v57, %v95
    %v172 = vsub.f32 %v58, %v96
    %v173 = vsub.f32 %v59, %v97
    %v174 = vsub.f32 %v60, %v98
    %v175 = vsub.f32 %v61, %v99
    %v176 = vsub.f32 %v62, %v100
    %v177 = vsub.f32 %v63, %v101
    %v178 = vsub.f32 %v64, %v102
    %v179 = vsub.f32 %v65, %v103
    %v180 = vsub.f32 %v66, %v104
    %v181 = vsub.f32 %v67, %v105
    %v182 = vsub.f32 %v68, %v106
    %v183 = vsub.f32 %v69, %v107
    %v184 = vsub.f32 %v70, %v108
    %v185 = vsub.f32 %v71, %v109
    %v186 = vsub.f32 %v72, %v110
    %v187 = vsub.f32 %v73, %v111
    %v188 = vsub.f32 %v74, %v112
    %v189 = vsub.f32 %v75, %v113
    %v190 = vsub.f32 %v76, %v114
    %v191 = vsub.f32 %v77, %v115
    %v192 = vsub.f32 %v78, %v116
    %v193 = vsub.f32 %v79, %v117
    %v194 = vsub.f32 %v80, %v118
    %v195 = vsub.f32 %v81, %v119
    %v196 = vsub.f32 %v82, %v120
    %v197 = vsub.f32 %v83, %v121
    %v198 = vsub.f32 %v84, %v122
    %v199 = vsub.f32 %v85, %v123
    %v200 = vsub.f32 %v86, %v124
    %v201 = vsub.f32 %v87, %v125
    %v202 = vsub.f32 %v88, %v126
    %v203 = vsub.f32 %v89, %v127
    %v204 = vsub.f32 %v90, %v128
    %v205 = vsub.f32 %v91, %v129
    %v206 = vsub.f32 %v92, %v130
    %v207 = vsub.f32 %v93, %v131
    %v208 = vsub.f32 %v56, %v132
    %v209 = vsub.f32 %v57, %v133
    %v210 = vsub.f32 %v58, %v134
    %v211 = vsub.f32 %v59, %v135
    %v212 = vsub.f32 %v60, %v136
    %v213 = vsub.f32 %v61, %v137
    %v214 = vsub.f32 %v62, %v138
    %v215 = vsub.f32 %v63, %v139
    %v216 = vsub.f32 %v64, %v140
    %v217 = vsub.f32 %v65, %v141
    %v218 = vsub.f32 %v66, %v142
    %v219 = vsub.f32 %v67, %v143
    %v220 = vsub.f32 %v68, %v144
    %v221 = vsub.f32 %v69, %v145
    %v222 = vsub.f32 %v70, %v146
    %v223 = vsub.f32 %v71, %v147
    %v224 = vsub.f32 %v72, %v148
    %v225 = vsub.f32 %v73, %v149
    %v226 = vsub.f32 %v74, %v150
    %v227 = vsub.f32 %v75, %v151
    %v228 = vsub.f32 %v76, %v152
    %v229 = vsub.f32 %v77, %v153
    %v230 = vsub.f32 %v78, %v154
    %v231 = vsub.f32 %v79, %v155
    %v232 = vsub.f32 %v80, %v156
    %v233 = vsub.f32 %v81, %v157
    %v234 = vsub.f32 %v82, %v158
    %v235 = vsub.f32 %v83, %v159
    %v236 = vsub.f32 %v84, %v160
    %v237 = vsub.f32 %v85, %v161
    %v238 = vsub.f32 %v86, %v162
    %v239 = vsub.f32 %v87, %v163
    %v240 = vsub.f32 %v88, %v164
    %v241 = vsub.f32 %v89, %v165
    %v242 = vsub.f32 %v90, %v166
    %v243 = vsub.f32 %v91, %v167
    %v244 = vsub.f32 %v92, %v168
    %v245 = vsub.f32 %v93, %v169
    %v246 = vmul.f32 %v170, %v170
    %v247 = vmul.f32 %v171, %v171
    %v248 = vmul.f32 %v172, %v172
    %v249 = vmul.f32 %v173, %v173
    %v250 = vmul.f32 %v174, %v174
    %v251 = vmul.f32 %v175, %v175
    %v252 = vmul.f32 %v176, %v176
    %v253 = vmul.f32 %v177, %v177
    %v254 = vmul.f32 %v178, %v178
    %v255 = vmul.f32 %v179, %v179
    %v256 = vmul.f32 %v180, %v180
    %v257 = vmul.f32 %v181, %v181
    %v258 = vmul.f32 %v182, %v182
    %v259 = vmul.f32 %v183, %v183
    %v260 = vmul.f32 %v184, %v184
    %v261 = vmul.f32 %v185, %v185
    %v262 = vmul.f32 %v186, %v186
    %v263 = vmul.f32 %v187, %v187
    %v264 = vmul.f32 %v188, %v188
    %v265 = vmul.f32 %v189, %v189
    %v266 = vmul.f32 %v190, %v190
    %v267 = vmul.f32 %v191, %v191
    %v268 = vmul.f32 %v192, %v192
    %v269 = vmul.f32 %v193, %v193
    %v270 = vmul.f32 %v194, %v194
    %v271 = vmul.f32 %v195, %v195
    %v272 = vmul.f32 %v196, %v196
    %v273 = vmul.f32 %v197, %v197
    %v274 = vmul.f32 %v198, %v198
    %v275 = vmul.f32 %v199, %v199
    %v276 = vmul.f32 %v200, %v200
    %v277 = vmul.f32 %v201, %v201
    %v278 = vmul.f32 %v202, %v202
    %v279 = vmul.f32 %v203, %v203
    %v280 = vmul.f32 %v204, %v204
    %v281 = vmul.f32 %v205, %v205
    %v282 = vmul.f32 %v206, %v206
    %v283 = vmul.f32 %v207, %v207
    %284 = vadd.xlane.f32.xlu0 %v246
    %v285 = vpop.xlane.xlu0 %284
    %286 = vadd.xlane.f32.xlu0 %v247
    %v287 = vpop.xlane.xlu0 %286
    %288 = vadd.xlane.f32.xlu0 %v248
    %v289 = vpop.xlane.xlu0 %288
    %290 = vadd.xlane.f32.xlu0 %v249
    %v291 = vpop.xlane.xlu0 %290
    %292 = vadd.xlane.f32.xlu0 %v250
    %v293 = vpop.xlane.xlu0 %292
    %294 = vadd.xlane.f32.xlu0 %v251
    %v295 = vpop.xlane.xlu0 %294
    %296 = vadd.xlane.f32.xlu0 %v252
    %v297 = vpop.xlane.xlu0 %296
    %298 = vadd.xlane.f32.xlu0 %v253
    %v299 = vpop.xlane.xlu0 %298
    %300 = vadd.xlane.f32.xlu0 %v254
    %v301 = vpop.xlane.xlu0 %300
    %302 = vadd.xlane.f32.xlu0 %v255
    %v303 = vpop.xlane.xlu0 %302
    %304 = vadd.xlane.f32.xlu0 %v256
    %v305 = vpop.xlane.xlu0 %304
    %306 = vadd.xlane.f32.xlu0 %v257
    %v307 = vpop.xlane.xlu0 %306
    %308 = vadd.xlane.f32.xlu0 %v258
    %v309 = vpop.xlane.xlu0 %308
    %310 = vadd.xlane.f32.xlu0 %v259
    %v311 = vpop.xlane.xlu0 %310
    %312 = vadd.xlane.f32.xlu0 %v260
    %v313 = vpop.xlane.xlu0 %312
    %314 = vadd.xlane.f32.xlu0 %v261
    %v315 = vpop.xlane.xlu0 %314
    %316 = vadd.xlane.f32.xlu0 %v262
    %v317 = vpop.xlane.xlu0 %316
    %318 = vadd.xlane.f32.xlu0 %v263
    %v319 = vpop.xlane.xlu0 %318
    %320 = vadd.xlane.f32.xlu0 %v264
    %v321 = vpop.xlane.xlu0 %320
    %322 = vadd.xlane.f32.xlu0 %v265
    %v323 = vpop.xlane.xlu0 %322
    %324 = vadd.xlane.f32.xlu0 %v266
    %v325 = vpop.xlane.xlu0 %324
    %326 = vadd.xlane.f32.xlu0 %v267
    %v327 = vpop.xlane.xlu0 %326
    %328 = vadd.xlane.f32.xlu0 %v268
    %v329 = vpop.xlane.xlu0 %328
    %330 = vadd.xlane.f32.xlu0 %v269
    %v331 = vpop.xlane.xlu0 %330
    %332 = vadd.xlane.f32.xlu0 %v270
    %v333 = vpop.xlane.xlu0 %332
    %334 = vadd.xlane.f32.xlu0 %v271
    %v335 = vpop.xlane.xlu0 %334
    %336 = vadd.xlane.f32.xlu0 %v272
    %v337 = vpop.xlane.xlu0 %336
    %338 = vadd.xlane.f32.xlu0 %v273
    %v339 = vpop.xlane.xlu0 %338
    %340 = vadd.xlane.f32.xlu0 %v274
    %v341 = vpop.xlane.xlu0 %340
    %342 = vadd.xlane.f32.xlu0 %v275
    %v343 = vpop.xlane.xlu0 %342
    %344 = vadd.xlane.f32.xlu0 %v276
    %v345 = vpop.xlane.xlu0 %344
    %346 = vadd.xlane.f32.xlu0 %v277
    %v347 = vpop.xlane.xlu0 %346
    %348 = vadd.xlane.f32.xlu0 %v278
    %v349 = vpop.xlane.xlu0 %348
    %350 = vadd.xlane.f32.xlu0 %v279
    %v351 = vpop.xlane.xlu0 %350
    %352 = vadd.xlane.f32.xlu0 %v280
    %v353 = vpop.xlane.xlu0 %352
    %354 = vadd.xlane.f32.xlu0 %v281
    %v355 = vpop.xlane.xlu0 %354
    %356 = vadd.xlane.f32.xlu0 %v282
    %v357 = vpop.xlane.xlu0 %356
    %vm358 = vcmask 1043456
    %v359 = vsel %vm358, %v283, 0.0
    %360 = vadd.xlane.f32.xlu0 %v359
    %v361 = vpop.xlane.xlu0 %360
    %v362 = vrsqrt.pop %v285
    %v363 = vmul.f32 %v285, %v362
    %vm364 = vcmp.eq.f32.partialorder %v285, inf
    %v365 = vsel %vm364, %v285, %v363
    %vm366 = vcmp.eq.f32.partialorder %v285, 0.0
    %v367 = vand.u32 %v285, 2147483648
    %v368 = vsel %vm366, %v367, %v365
    %v369 = vrsqrt.pop %v287
    %v370 = vmul.f32 %v287, %v369
    %vm371 = vcmp.eq.f32.partialorder %v287, inf
    %v372 = vsel %vm371, %v287, %v370
    %vm373 = vcmp.eq.f32.partialorder %v287, 0.0
    %v374 = vand.u32 %v287, 2147483648
    %v375 = vsel %vm373, %v374, %v372
    %v376 = vrsqrt.pop %v289
    %v377 = vmul.f32 %v289, %v376
    %vm378 = vcmp.eq.f32.partialorder %v289, inf
    %v379 = vsel %vm378, %v289, %v377
    %vm380 = vcmp.eq.f32.partialorder %v289, 0.0
    %v381 = vand.u32 %v289, 2147483648
    %v382 = vsel %vm380, %v381, %v379
    %v383 = vrsqrt.pop %v291
    %v384 = vmul.f32 %v291, %v383
    %vm385 = vcmp.eq.f32.partialorder %v291, inf
    %v386 = vsel %vm385, %v291, %v384
    %vm387 = vcmp.eq.f32.partialorder %v291, 0.0
    %v388 = vand.u32 %v291, 2147483648
    %v389 = vsel %vm387, %v388, %v386
    %v390 = vrsqrt.pop %v293
    %v391 = vmul.f32 %v293, %v390
    %vm392 = vcmp.eq.f32.partialorder %v293, inf
    %v393 = vsel %vm392, %v293, %v391
    %vm394 = vcmp.eq.f32.partialorder %v293, 0.0
    %v395 = vand.u32 %v293, 2147483648
    %v396 = vsel %vm394, %v395, %v393
    %v397 = vrsqrt.pop %v295
    %v398 = vmul.f32 %v295, %v397
    %vm399 = vcmp.eq.f32.partialorder %v295, inf
    %v400 = vsel %vm399, %v295, %v398
    %vm401 = vcmp.eq.f32.partialorder %v295, 0.0
    %v402 = vand.u32 %v295, 2147483648
    %v403 = vsel %vm401, %v402, %v400
    %v404 = vrsqrt.pop %v297
    %v405 = vmul.f32 %v297, %v404
    %vm406 = vcmp.eq.f32.partialorder %v297, inf
    %v407 = vsel %vm406, %v297, %v405
    %vm408 = vcmp.eq.f32.partialorder %v297, 0.0
    %v409 = vand.u32 %v297, 2147483648
    %v410 = vsel %vm408, %v409, %v407
    %v411 = vrsqrt.pop %v299
    %v412 = vmul.f32 %v299, %v411
    %vm413 = vcmp.eq.f32.partialorder %v299, inf
    %v414 = vsel %vm413, %v299, %v412
    %vm415 = vcmp.eq.f32.partialorder %v299, 0.0
    %v416 = vand.u32 %v299, 2147483648
    %v417 = vsel %vm415, %v416, %v414
    %v418 = vrsqrt.pop %v301
    %v419 = vmul.f32 %v301, %v418
    %vm420 = vcmp.eq.f32.partialorder %v301, inf
    %v421 = vsel %vm420, %v301, %v419
    %vm422 = vcmp.eq.f32.partialorder %v301, 0.0
    %v423 = vand.u32 %v301, 2147483648
    %v424 = vsel %vm422, %v423, %v421
    %v425 = vrsqrt.pop %v303
    %v426 = vmul.f32 %v303, %v425
    %vm427 = vcmp.eq.f32.partialorder %v303, inf
    %v428 = vsel %vm427, %v303, %v426
    %vm429 = vcmp.eq.f32.partialorder %v303, 0.0
    %v430 = vand.u32 %v303, 2147483648
    %v431 = vsel %vm429, %v430, %v428
    %v432 = vrsqrt.pop %v305
    %v433 = vmul.f32 %v305, %v432
    %vm434 = vcmp.eq.f32.partialorder %v305, inf
    %v435 = vsel %vm434, %v305, %v433
    %vm436 = vcmp.eq.f32.partialorder %v305, 0.0
    %v437 = vand.u32 %v305, 2147483648
    %v438 = vsel %vm436, %v437, %v435
    %v439 = vrsqrt.pop %v307
    %v440 = vmul.f32 %v307, %v439
    %vm441 = vcmp.eq.f32.partialorder %v307, inf
    %v442 = vsel %vm441, %v307, %v440
    %vm443 = vcmp.eq.f32.partialorder %v307, 0.0
    %v444 = vand.u32 %v307, 2147483648
    %v445 = vsel %vm443, %v444, %v442
    %v446 = vrsqrt.pop %v309
    %v447 = vmul.f32 %v309, %v446
    %vm448 = vcmp.eq.f32.partialorder %v309, inf
    %v449 = vsel %vm448, %v309, %v447
    %vm450 = vcmp.eq.f32.partialorder %v309, 0.0
    %v451 = vand.u32 %v309, 2147483648
    %v452 = vsel %vm450, %v451, %v449
    %v453 = vrsqrt.pop %v311
    %v454 = vmul.f32 %v311, %v453
    %vm455 = vcmp.eq.f32.partialorder %v311, inf
    %v456 = vsel %vm455, %v311, %v454
    %vm457 = vcmp.eq.f32.partialorder %v311, 0.0
    %v458 = vand.u32 %v311, 2147483648
    %v459 = vsel %vm457, %v458, %v456
    %v460 = vrsqrt.pop %v313
    %v461 = vmul.f32 %v313, %v460
    %vm462 = vcmp.eq.f32.partialorder %v313, inf
    %v463 = vsel %vm462, %v313, %v461
    %vm464 = vcmp.eq.f32.partialorder %v313, 0.0
    %v465 = vand.u32 %v313, 2147483648
    %v466 = vsel %vm464, %v465, %v463
    %v467 = vrsqrt.pop %v315
    %v468 = vmul.f32 %v315, %v467
    %vm469 = vcmp.eq.f32.partialorder %v315, inf
    %v470 = vsel %vm469, %v315, %v468
    %vm471 = vcmp.eq.f32.partialorder %v315, 0.0
    %v472 = vand.u32 %v315, 2147483648
    %v473 = vsel %vm471, %v472, %v470
    %v474 = vrsqrt.pop %v317
    %v475 = vmul.f32 %v317, %v474
    %vm476 = vcmp.eq.f32.partialorder %v317, inf
    %v477 = vsel %vm476, %v317, %v475
    %vm478 = vcmp.eq.f32.partialorder %v317, 0.0
    %v479 = vand.u32 %v317, 2147483648
    %v480 = vsel %vm478, %v479, %v477
    %v481 = vrsqrt.pop %v319
    %v482 = vmul.f32 %v319, %v481
    %vm483 = vcmp.eq.f32.partialorder %v319, inf
    %v484 = vsel %vm483, %v319, %v482
    %vm485 = vcmp.eq.f32.partialorder %v319, 0.0
    %v486 = vand.u32 %v319, 2147483648
    %v487 = vsel %vm485, %v486, %v484
    %v488 = vrsqrt.pop %v321
    %v489 = vmul.f32 %v321, %v488
    %vm490 = vcmp.eq.f32.partialorder %v321, inf
    %v491 = vsel %vm490, %v321, %v489
    %vm492 = vcmp.eq.f32.partialorder %v321, 0.0
    %v493 = vand.u32 %v321, 2147483648
    %v494 = vsel %vm492, %v493, %v491
    %v495 = vrsqrt.pop %v323
    %v496 = vmul.f32 %v323, %v495
    %vm497 = vcmp.eq.f32.partialorder %v323, inf
    %v498 = vsel %vm497, %v323, %v496
    %vm499 = vcmp.eq.f32.partialorder %v323, 0.0
    %v500 = vand.u32 %v323, 2147483648
    %v501 = vsel %vm499, %v500, %v498
    %v502 = vrsqrt.pop %v325
    %v503 = vmul.f32 %v325, %v502
    %vm504 = vcmp.eq.f32.partialorder %v325, inf
    %v505 = vsel %vm504, %v325, %v503
    %vm506 = vcmp.eq.f32.partialorder %v325, 0.0
    %v507 = vand.u32 %v325, 2147483648
    %v508 = vsel %vm506, %v507, %v505
    %v509 = vrsqrt.pop %v327
    %v510 = vmul.f32 %v327, %v509
    %vm511 = vcmp.eq.f32.partialorder %v327, inf
    %v512 = vsel %vm511, %v327, %v510
    %vm513 = vcmp.eq.f32.partialorder %v327, 0.0
    %v514 = vand.u32 %v327, 2147483648
    %v515 = vsel %vm513, %v514, %v512
    %v516 = vrsqrt.pop %v329
    %v517 = vmul.f32 %v329, %v516
    %vm518 = vcmp.eq.f32.partialorder %v329, inf
    %v519 = vsel %vm518, %v329, %v517
    %vm520 = vcmp.eq.f32.partialorder %v329, 0.0
    %v521 = vand.u32 %v329, 2147483648
    %v522 = vsel %vm520, %v521, %v519
    %v523 = vrsqrt.pop %v331
    %v524 = vmul.f32 %v331, %v523
    %vm525 = vcmp.eq.f32.partialorder %v331, inf
    %v526 = vsel %vm525, %v331, %v524
    %vm527 = vcmp.eq.f32.partialorder %v331, 0.0
    %v528 = vand.u32 %v331, 2147483648
    %v529 = vsel %vm527, %v528, %v526
    %v530 = vrsqrt.pop %v333
    %v531 = vmul.f32 %v333, %v530
    %vm532 = vcmp.eq.f32.partialorder %v333, inf
    %v533 = vsel %vm532, %v333, %v531
    %vm534 = vcmp.eq.f32.partialorder %v333, 0.0
    %v535 = vand.u32 %v333, 2147483648
    %v536 = vsel %vm534, %v535, %v533
    %v537 = vrsqrt.pop %v335
    %v538 = vmul.f32 %v335, %v537
    %vm539 = vcmp.eq.f32.partialorder %v335, inf
    %v540 = vsel %vm539, %v335, %v538
    %vm541 = vcmp.eq.f32.partialorder %v335, 0.0
    %v542 = vand.u32 %v335, 2147483648
    %v543 = vsel %vm541, %v542, %v540
    %v544 = vrsqrt.pop %v337
    %v545 = vmul.f32 %v337, %v544
    %vm546 = vcmp.eq.f32.partialorder %v337, inf
    %v547 = vsel %vm546, %v337, %v545
    %vm548 = vcmp.eq.f32.partialorder %v337, 0.0
    %v549 = vand.u32 %v337, 2147483648
    %v550 = vsel %vm548, %v549, %v547
    %v551 = vrsqrt.pop %v339
    %v552 = vmul.f32 %v339, %v551
    %vm553 = vcmp.eq.f32.partialorder %v339, inf
    %v554 = vsel %vm553, %v339, %v552
    %vm555 = vcmp.eq.f32.partialorder %v339, 0.0
    %v556 = vand.u32 %v339, 2147483648
    %v557 = vsel %vm555, %v556, %v554
    %v558 = vrsqrt.pop %v341
    %v559 = vmul.f32 %v341, %v558
    %vm560 = vcmp.eq.f32.partialorder %v341, inf
    %v561 = vsel %vm560, %v341, %v559
    %vm562 = vcmp.eq.f32.partialorder %v341, 0.0
    %v563 = vand.u32 %v341, 2147483648
    %v564 = vsel %vm562, %v563, %v561
    %v565 = vrsqrt.pop %v343
    %v566 = vmul.f32 %v343, %v565
    %vm567 = vcmp.eq.f32.partialorder %v343, inf
    %v568 = vsel %vm567, %v343, %v566
    %vm569 = vcmp.eq.f32.partialorder %v343, 0.0
    %v570 = vand.u32 %v343, 2147483648
    %v571 = vsel %vm569, %v570, %v568
    %v572 = vrsqrt.pop %v345
    %v573 = vmul.f32 %v345, %v572
    %vm574 = vcmp.eq.f32.partialorder %v345, inf
    %v575 = vsel %vm574, %v345, %v573
    %vm576 = vcmp.eq.f32.partialorder %v345, 0.0
    %v577 = vand.u32 %v345, 2147483648
    %v578 = vsel %vm576, %v577, %v575
    %v579 = vrsqrt.pop %v347
    %v580 = vmul.f32 %v347, %v579
    %vm581 = vcmp.eq.f32.partialorder %v347, inf
    %v582 = vsel %vm581, %v347, %v580
    %vm583 = vcmp.eq.f32.partialorder %v347, 0.0
    %v584 = vand.u32 %v347, 2147483648
    %v585 = vsel %vm583, %v584, %v582
    %v586 = vrsqrt.pop %v349
    %v587 = vmul.f32 %v349, %v586
    %vm588 = vcmp.eq.f32.partialorder %v349, inf
    %v589 = vsel %vm588, %v349, %v587
    %vm590 = vcmp.eq.f32.partialorder %v349, 0.0
    %v591 = vand.u32 %v349, 2147483648
    %v592 = vsel %vm590, %v591, %v589
    %v593 = vrsqrt.pop %v351
    %v594 = vmul.f32 %v351, %v593
    %vm595 = vcmp.eq.f32.partialorder %v351, inf
    %v596 = vsel %vm595, %v351, %v594
    %vm597 = vcmp.eq.f32.partialorder %v351, 0.0
    %v598 = vand.u32 %v351, 2147483648
    %v599 = vsel %vm597, %v598, %v596
    %v600 = vrsqrt.pop %v353
    %v601 = vmul.f32 %v353, %v600
    %vm602 = vcmp.eq.f32.partialorder %v353, inf
    %v603 = vsel %vm602, %v353, %v601
    %vm604 = vcmp.eq.f32.partialorder %v353, 0.0
    %v605 = vand.u32 %v353, 2147483648
    %v606 = vsel %vm604, %v605, %v603
    %v607 = vrsqrt.pop %v355
    %v608 = vmul.f32 %v355, %v607
    %vm609 = vcmp.eq.f32.partialorder %v355, inf
    %v610 = vsel %vm609, %v355, %v608
    %vm611 = vcmp.eq.f32.partialorder %v355, 0.0
    %v612 = vand.u32 %v355, 2147483648
    %v613 = vsel %vm611, %v612, %v610
    %v614 = vrsqrt.pop %v357
    %v615 = vmul.f32 %v357, %v614
    %vm616 = vcmp.eq.f32.partialorder %v357, inf
    %v617 = vsel %vm616, %v357, %v615
    %vm618 = vcmp.eq.f32.partialorder %v357, 0.0
    %v619 = vand.u32 %v357, 2147483648
    %v620 = vsel %vm618, %v619, %v617
    %v621 = vrsqrt.pop %v361
    %v622 = vmul.f32 %v361, %v621
    %vm623 = vcmp.eq.f32.partialorder %v361, inf
    %v624 = vsel %vm623, %v361, %v622
    %vm625 = vcmp.eq.f32.partialorder %v361, 0.0
    %v626 = vand.u32 %v361, 2147483648
    %v627 = vsel %vm625, %v626, %v624
    %v628 = vmul.f32 %v208, %v208
    %v629 = vmul.f32 %v209, %v209
    %v630 = vmul.f32 %v210, %v210
    %v631 = vmul.f32 %v211, %v211
    %v632 = vmul.f32 %v212, %v212
    %v633 = vmul.f32 %v213, %v213
    %v634 = vmul.f32 %v214, %v214
    %v635 = vmul.f32 %v215, %v215
    %v636 = vmul.f32 %v216, %v216
    %v637 = vmul.f32 %v217, %v217
    %v638 = vmul.f32 %v218, %v218
    %v639 = vmul.f32 %v219, %v219
    %v640 = vmul.f32 %v220, %v220
    %v641 = vmul.f32 %v221, %v221
    %v642 = vmul.f32 %v222, %v222
    %v643 = vmul.f32 %v223, %v223
    %v644 = vmul.f32 %v224, %v224
    %v645 = vmul.f32 %v225, %v225
    %v646 = vmul.f32 %v226, %v226
    %v647 = vmul.f32 %v227, %v227
    %v648 = vmul.f32 %v228, %v228
    %v649 = vmul.f32 %v229, %v229
    %v650 = vmul.f32 %v230, %v230
    %v651 = vmul.f32 %v231, %v231
    %v652 = vmul.f32 %v232, %v232
    %v653 = vmul.f32 %v233, %v233
    %v654 = vmul.f32 %v234, %v234
    %v655 = vmul.f32 %v235, %v235
    %v656 = vmul.f32 %v236, %v236
    %v657 = vmul.f32 %v237, %v237
    %v658 = vmul.f32 %v238, %v238
    %v659 = vmul.f32 %v239, %v239
    %v660 = vmul.f32 %v240, %v240
    %v661 = vmul.f32 %v241, %v241
    %v662 = vmul.f32 %v242, %v242
    %v663 = vmul.f32 %v243, %v243
    %v664 = vmul.f32 %v244, %v244
    %v665 = vmul.f32 %v245, %v245
    %666 = vadd.xlane.f32.xlu0 %v628
    %v667 = vpop.xlane.xlu0 %666
    %668 = vadd.xlane.f32.xlu0 %v629
    %v669 = vpop.xlane.xlu0 %668
    %670 = vadd.xlane.f32.xlu0 %v630
    %v671 = vpop.xlane.xlu0 %670
    %672 = vadd.xlane.f32.xlu0 %v631
    %v673 = vpop.xlane.xlu0 %672
    %674 = vadd.xlane.f32.xlu0 %v632
    %v675 = vpop.xlane.xlu0 %674
    %676 = vadd.xlane.f32.xlu0 %v633
    %v677 = vpop.xlane.xlu0 %676
    %678 = vadd.xlane.f32.xlu0 %v634
    %v679 = vpop.xlane.xlu0 %678
    %680 = vadd.xlane.f32.xlu0 %v635
    %v681 = vpop.xlane.xlu0 %680
    %682 = vadd.xlane.f32.xlu0 %v636
    %v683 = vpop.xlane.xlu0 %682
    %684 = vadd.xlane.f32.xlu0 %v637
    %v685 = vpop.xlane.xlu0 %684
    %686 = vadd.xlane.f32.xlu0 %v638
    %v687 = vpop.xlane.xlu0 %686
    %688 = vadd.xlane.f32.xlu0 %v639
    %v689 = vpop.xlane.xlu0 %688
    %690 = vadd.xlane.f32.xlu0 %v640
    %v691 = vpop.xlane.xlu0 %690
    %692 = vadd.xlane.f32.xlu0 %v641
    %v693 = vpop.xlane.xlu0 %692
    %694 = vadd.xlane.f32.xlu0 %v642
    %v695 = vpop.xlane.xlu0 %694
    %696 = vadd.xlane.f32.xlu0 %v643
    %v697 = vpop.xlane.xlu0 %696
    %698 = vadd.xlane.f32.xlu0 %v644
    %v699 = vpop.xlane.xlu0 %698
    %700 = vadd.xlane.f32.xlu0 %v645
    %v701 = vpop.xlane.xlu0 %700
    %702 = vadd.xlane.f32.xlu0 %v646
    %v703 = vpop.xlane.xlu0 %702
    %704 = vadd.xlane.f32.xlu0 %v647
    %v705 = vpop.xlane.xlu0 %704
    %706 = vadd.xlane.f32.xlu0 %v648
    %v707 = vpop.xlane.xlu0 %706
    %708 = vadd.xlane.f32.xlu0 %v649
    %v709 = vpop.xlane.xlu0 %708
    %710 = vadd.xlane.f32.xlu0 %v650
    %v711 = vpop.xlane.xlu0 %710
    %712 = vadd.xlane.f32.xlu0 %v651
    %v713 = vpop.xlane.xlu0 %712
    %714 = vadd.xlane.f32.xlu0 %v652
    %v715 = vpop.xlane.xlu0 %714
    %716 = vadd.xlane.f32.xlu0 %v653
    %v717 = vpop.xlane.xlu0 %716
    %718 = vadd.xlane.f32.xlu0 %v654
    %v719 = vpop.xlane.xlu0 %718
    %720 = vadd.xlane.f32.xlu0 %v655
    %v721 = vpop.xlane.xlu0 %720
    %722 = vadd.xlane.f32.xlu0 %v656
    %v723 = vpop.xlane.xlu0 %722
    %724 = vadd.xlane.f32.xlu0 %v657
    %v725 = vpop.xlane.xlu0 %724
    %726 = vadd.xlane.f32.xlu0 %v658
    %v727 = vpop.xlane.xlu0 %726
    %728 = vadd.xlane.f32.xlu0 %v659
    %v729 = vpop.xlane.xlu0 %728
    %730 = vadd.xlane.f32.xlu0 %v660
    %v731 = vpop.xlane.xlu0 %730
    %732 = vadd.xlane.f32.xlu0 %v661
    %v733 = vpop.xlane.xlu0 %732
    %734 = vadd.xlane.f32.xlu0 %v662
    %v735 = vpop.xlane.xlu0 %734
    %736 = vadd.xlane.f32.xlu0 %v663
    %v737 = vpop.xlane.xlu0 %736
    %738 = vadd.xlane.f32.xlu0 %v664
    %v739 = vpop.xlane.xlu0 %738
    %v740 = vsel %vm358, %v665, 0.0
    %741 = vadd.xlane.f32.xlu0 %v740
    %v742 = vpop.xlane.xlu0 %741
    %v743 = vrsqrt.pop %v667
    %v744 = vmul.f32 %v667, %v743
    %vm745 = vcmp.eq.f32.partialorder %v667, inf
    %v746 = vsel %vm745, %v667, %v744
    %vm747 = vcmp.eq.f32.partialorder %v667, 0.0
    %v748 = vand.u32 %v667, 2147483648
    %v749 = vsel %vm747, %v748, %v746
    %v750 = vrsqrt.pop %v669
    %v751 = vmul.f32 %v669, %v750
    %vm752 = vcmp.eq.f32.partialorder %v669, inf
    %v753 = vsel %vm752, %v669, %v751
    %vm754 = vcmp.eq.f32.partialorder %v669, 0.0
    %v755 = vand.u32 %v669, 2147483648
    %v756 = vsel %vm754, %v755, %v753
    %v757 = vrsqrt.pop %v671
    %v758 = vmul.f32 %v671, %v757
    %vm759 = vcmp.eq.f32.partialorder %v671, inf
    %v760 = vsel %vm759, %v671, %v758
    %vm761 = vcmp.eq.f32.partialorder %v671, 0.0
    %v762 = vand.u32 %v671, 2147483648
    %v763 = vsel %vm761, %v762, %v760
    %v764 = vrsqrt.pop %v673
    %v765 = vmul.f32 %v673, %v764
    %vm766 = vcmp.eq.f32.partialorder %v673, inf
    %v767 = vsel %vm766, %v673, %v765
    %vm768 = vcmp.eq.f32.partialorder %v673, 0.0
    %v769 = vand.u32 %v673, 2147483648
    %v770 = vsel %vm768, %v769, %v767
    %v771 = vrsqrt.pop %v675
    %v772 = vmul.f32 %v675, %v771
    %vm773 = vcmp.eq.f32.partialorder %v675, inf
    %v774 = vsel %vm773, %v675, %v772
    %vm775 = vcmp.eq.f32.partialorder %v675, 0.0
    %v776 = vand.u32 %v675, 2147483648
    %v777 = vsel %vm775, %v776, %v774
    %v778 = vrsqrt.pop %v677
    %v779 = vmul.f32 %v677, %v778
    %vm780 = vcmp.eq.f32.partialorder %v677, inf
    %v781 = vsel %vm780, %v677, %v779
    %vm782 = vcmp.eq.f32.partialorder %v677, 0.0
    %v783 = vand.u32 %v677, 2147483648
    %v784 = vsel %vm782, %v783, %v781
    %v785 = vrsqrt.pop %v679
    %v786 = vmul.f32 %v679, %v785
    %vm787 = vcmp.eq.f32.partialorder %v679, inf
    %v788 = vsel %vm787, %v679, %v786
    %vm789 = vcmp.eq.f32.partialorder %v679, 0.0
    %v790 = vand.u32 %v679, 2147483648
    %v791 = vsel %vm789, %v790, %v788
    %v792 = vrsqrt.pop %v681
    %v793 = vmul.f32 %v681, %v792
    %vm794 = vcmp.eq.f32.partialorder %v681, inf
    %v795 = vsel %vm794, %v681, %v793
    %vm796 = vcmp.eq.f32.partialorder %v681, 0.0
    %v797 = vand.u32 %v681, 2147483648
    %v798 = vsel %vm796, %v797, %v795
    %v799 = vrsqrt.pop %v683
    %v800 = vmul.f32 %v683, %v799
    %vm801 = vcmp.eq.f32.partialorder %v683, inf
    %v802 = vsel %vm801, %v683, %v800
    %vm803 = vcmp.eq.f32.partialorder %v683, 0.0
    %v804 = vand.u32 %v683, 2147483648
    %v805 = vsel %vm803, %v804, %v802
    %v806 = vrsqrt.pop %v685
    %v807 = vmul.f32 %v685, %v806
    %vm808 = vcmp.eq.f32.partialorder %v685, inf
    %v809 = vsel %vm808, %v685, %v807
    %vm810 = vcmp.eq.f32.partialorder %v685, 0.0
    %v811 = vand.u32 %v685, 2147483648
    %v812 = vsel %vm810, %v811, %v809
    %v813 = vrsqrt.pop %v687
    %v814 = vmul.f32 %v687, %v813
    %vm815 = vcmp.eq.f32.partialorder %v687, inf
    %v816 = vsel %vm815, %v687, %v814
    %vm817 = vcmp.eq.f32.partialorder %v687, 0.0
    %v818 = vand.u32 %v687, 2147483648
    %v819 = vsel %vm817, %v818, %v816
    %v820 = vrsqrt.pop %v689
    %v821 = vmul.f32 %v689, %v820
    %vm822 = vcmp.eq.f32.partialorder %v689, inf
    %v823 = vsel %vm822, %v689, %v821
    %vm824 = vcmp.eq.f32.partialorder %v689, 0.0
    %v825 = vand.u32 %v689, 2147483648
    %v826 = vsel %vm824, %v825, %v823
    %v827 = vrsqrt.pop %v691
    %v828 = vmul.f32 %v691, %v827
    %vm829 = vcmp.eq.f32.partialorder %v691, inf
    %v830 = vsel %vm829, %v691, %v828
    %vm831 = vcmp.eq.f32.partialorder %v691, 0.0
    %v832 = vand.u32 %v691, 2147483648
    %v833 = vsel %vm831, %v832, %v830
    %v834 = vrsqrt.pop %v693
    %v835 = vmul.f32 %v693, %v834
    %vm836 = vcmp.eq.f32.partialorder %v693, inf
    %v837 = vsel %vm836, %v693, %v835
    %vm838 = vcmp.eq.f32.partialorder %v693, 0.0
    %v839 = vand.u32 %v693, 2147483648
    %v840 = vsel %vm838, %v839, %v837
    %v841 = vrsqrt.pop %v695
    %v842 = vmul.f32 %v695, %v841
    %vm843 = vcmp.eq.f32.partialorder %v695, inf
    %v844 = vsel %vm843, %v695, %v842
    %vm845 = vcmp.eq.f32.partialorder %v695, 0.0
    %v846 = vand.u32 %v695, 2147483648
    %v847 = vsel %vm845, %v846, %v844
    %v848 = vrsqrt.pop %v697
    %v849 = vmul.f32 %v697, %v848
    %vm850 = vcmp.eq.f32.partialorder %v697, inf
    %v851 = vsel %vm850, %v697, %v849
    %vm852 = vcmp.eq.f32.partialorder %v697, 0.0
    %v853 = vand.u32 %v697, 2147483648
    %v854 = vsel %vm852, %v853, %v851
    %v855 = vrsqrt.pop %v699
    %v856 = vmul.f32 %v699, %v855
    %vm857 = vcmp.eq.f32.partialorder %v699, inf
    %v858 = vsel %vm857, %v699, %v856
    %vm859 = vcmp.eq.f32.partialorder %v699, 0.0
    %v860 = vand.u32 %v699, 2147483648
    %v861 = vsel %vm859, %v860, %v858
    %v862 = vrsqrt.pop %v701
    %v863 = vmul.f32 %v701, %v862
    %vm864 = vcmp.eq.f32.partialorder %v701, inf
    %v865 = vsel %vm864, %v701, %v863
    %vm866 = vcmp.eq.f32.partialorder %v701, 0.0
    %v867 = vand.u32 %v701, 2147483648
    %v868 = vsel %vm866, %v867, %v865
    %v869 = vrsqrt.pop %v703
    %v870 = vmul.f32 %v703, %v869
    %vm871 = vcmp.eq.f32.partialorder %v703, inf
    %v872 = vsel %vm871, %v703, %v870
    %vm873 = vcmp.eq.f32.partialorder %v703, 0.0
    %v874 = vand.u32 %v703, 2147483648
    %v875 = vsel %vm873, %v874, %v872
    %v876 = vrsqrt.pop %v705
    %v877 = vmul.f32 %v705, %v876
    %vm878 = vcmp.eq.f32.partialorder %v705, inf
    %v879 = vsel %vm878, %v705, %v877
    %vm880 = vcmp.eq.f32.partialorder %v705, 0.0
    %v881 = vand.u32 %v705, 2147483648
    %v882 = vsel %vm880, %v881, %v879
    %v883 = vrsqrt.pop %v707
    %v884 = vmul.f32 %v707, %v883
    %vm885 = vcmp.eq.f32.partialorder %v707, inf
    %v886 = vsel %vm885, %v707, %v884
    %vm887 = vcmp.eq.f32.partialorder %v707, 0.0
    %v888 = vand.u32 %v707, 2147483648
    %v889 = vsel %vm887, %v888, %v886
    %v890 = vrsqrt.pop %v709
    %v891 = vmul.f32 %v709, %v890
    %vm892 = vcmp.eq.f32.partialorder %v709, inf
    %v893 = vsel %vm892, %v709, %v891
    %vm894 = vcmp.eq.f32.partialorder %v709, 0.0
    %v895 = vand.u32 %v709, 2147483648
    %v896 = vsel %vm894, %v895, %v893
    %v897 = vrsqrt.pop %v711
    %v898 = vmul.f32 %v711, %v897
    %vm899 = vcmp.eq.f32.partialorder %v711, inf
    %v900 = vsel %vm899, %v711, %v898
    %vm901 = vcmp.eq.f32.partialorder %v711, 0.0
    %v902 = vand.u32 %v711, 2147483648
    %v903 = vsel %vm901, %v902, %v900
    %v904 = vrsqrt.pop %v713
    %v905 = vmul.f32 %v713, %v904
    %vm906 = vcmp.eq.f32.partialorder %v713, inf
    %v907 = vsel %vm906, %v713, %v905
    %vm908 = vcmp.eq.f32.partialorder %v713, 0.0
    %v909 = vand.u32 %v713, 2147483648
    %v910 = vsel %vm908, %v909, %v907
    %v911 = vrsqrt.pop %v715
    %v912 = vmul.f32 %v715, %v911
    %vm913 = vcmp.eq.f32.partialorder %v715, inf
    %v914 = vsel %vm913, %v715, %v912
    %vm915 = vcmp.eq.f32.partialorder %v715, 0.0
    %v916 = vand.u32 %v715, 2147483648
    %v917 = vsel %vm915, %v916, %v914
    %v918 = vrsqrt.pop %v717
    %v919 = vmul.f32 %v717, %v918
    %vm920 = vcmp.eq.f32.partialorder %v717, inf
    %v921 = vsel %vm920, %v717, %v919
    %vm922 = vcmp.eq.f32.partialorder %v717, 0.0
    %v923 = vand.u32 %v717, 2147483648
    %v924 = vsel %vm922, %v923, %v921
    %v925 = vrsqrt.pop %v719
    %v926 = vmul.f32 %v719, %v925
    %vm927 = vcmp.eq.f32.partialorder %v719, inf
    %v928 = vsel %vm927, %v719, %v926
    %vm929 = vcmp.eq.f32.partialorder %v719, 0.0
    %v930 = vand.u32 %v719, 2147483648
    %v931 = vsel %vm929, %v930, %v928
    %v932 = vrsqrt.pop %v721
    %v933 = vmul.f32 %v721, %v932
    %vm934 = vcmp.eq.f32.partialorder %v721, inf
    %v935 = vsel %vm934, %v721, %v933
    %vm936 = vcmp.eq.f32.partialorder %v721, 0.0
    %v937 = vand.u32 %v721, 2147483648
    %v938 = vsel %vm936, %v937, %v935
    %v939 = vrsqrt.pop %v723
    %v940 = vmul.f32 %v723, %v939
    %vm941 = vcmp.eq.f32.partialorder %v723, inf
    %v942 = vsel %vm941, %v723, %v940
    %vm943 = vcmp.eq.f32.partialorder %v723, 0.0
    %v944 = vand.u32 %v723, 2147483648
    %v945 = vsel %vm943, %v944, %v942
    %v946 = vrsqrt.pop %v725
    %v947 = vmul.f32 %v725, %v946
    %vm948 = vcmp.eq.f32.partialorder %v725, inf
    %v949 = vsel %vm948, %v725, %v947
    %vm950 = vcmp.eq.f32.partialorder %v725, 0.0
    %v951 = vand.u32 %v725, 2147483648
    %v952 = vsel %vm950, %v951, %v949
    %v953 = vrsqrt.pop %v727
    %v954 = vmul.f32 %v727, %v953
    %vm955 = vcmp.eq.f32.partialorder %v727, inf
    %v956 = vsel %vm955, %v727, %v954
    %vm957 = vcmp.eq.f32.partialorder %v727, 0.0
    %v958 = vand.u32 %v727, 2147483648
    %v959 = vsel %vm957, %v958, %v956
    %v960 = vrsqrt.pop %v729
    %v961 = vmul.f32 %v729, %v960
    %vm962 = vcmp.eq.f32.partialorder %v729, inf
    %v963 = vsel %vm962, %v729, %v961
    %vm964 = vcmp.eq.f32.partialorder %v729, 0.0
    %v965 = vand.u32 %v729, 2147483648
    %v966 = vsel %vm964, %v965, %v963
    %v967 = vrsqrt.pop %v731
    %v968 = vmul.f32 %v731, %v967
    %vm969 = vcmp.eq.f32.partialorder %v731, inf
    %v970 = vsel %vm969, %v731, %v968
    %vm971 = vcmp.eq.f32.partialorder %v731, 0.0
    %v972 = vand.u32 %v731, 2147483648
    %v973 = vsel %vm971, %v972, %v970
    %v974 = vrsqrt.pop %v733
    %v975 = vmul.f32 %v733, %v974
    %vm976 = vcmp.eq.f32.partialorder %v733, inf
    %v977 = vsel %vm976, %v733, %v975
    %vm978 = vcmp.eq.f32.partialorder %v733, 0.0
    %v979 = vand.u32 %v733, 2147483648
    %v980 = vsel %vm978, %v979, %v977
    %v981 = vrsqrt.pop %v735
    %v982 = vmul.f32 %v735, %v981
    %vm983 = vcmp.eq.f32.partialorder %v735, inf
    %v984 = vsel %vm983, %v735, %v982
    %vm985 = vcmp.eq.f32.partialorder %v735, 0.0
    %v986 = vand.u32 %v735, 2147483648
    %v987 = vsel %vm985, %v986, %v984
    %v988 = vrsqrt.pop %v737
    %v989 = vmul.f32 %v737, %v988
    %vm990 = vcmp.eq.f32.partialorder %v737, inf
    %v991 = vsel %vm990, %v737, %v989
    %vm992 = vcmp.eq.f32.partialorder %v737, 0.0
    %v993 = vand.u32 %v737, 2147483648
    %v994 = vsel %vm992, %v993, %v991
    %v995 = vrsqrt.pop %v739
    %v996 = vmul.f32 %v739, %v995
    %vm997 = vcmp.eq.f32.partialorder %v739, inf
    %v998 = vsel %vm997, %v739, %v996
    %vm999 = vcmp.eq.f32.partialorder %v739, 0.0
    %v1000 = vand.u32 %v739, 2147483648
    %v1001 = vsel %vm999, %v1000, %v998
    %v1002 = vrsqrt.pop %v742
    %v1003 = vmul.f32 %v742, %v1002
    %vm1004 = vcmp.eq.f32.partialorder %v742, inf
    %v1005 = vsel %vm1004, %v742, %v1003
    %vm1006 = vcmp.eq.f32.partialorder %v742, 0.0
    %v1007 = vand.u32 %v742, 2147483648
    %v1008 = vsel %vm1006, %v1007, %v1005
    %v1009 = vsub.f32 %v368, %v749
    %v1010 = vsub.f32 %v375, %v756
    %v1011 = vsub.f32 %v382, %v763
    %v1012 = vsub.f32 %v389, %v770
    %v1013 = vsub.f32 %v396, %v777
    %v1014 = vsub.f32 %v403, %v784
    %v1015 = vsub.f32 %v410, %v791
    %v1016 = vsub.f32 %v417, %v798
    %v1017 = vsub.f32 %v424, %v805
    %v1018 = vsub.f32 %v431, %v812
    %v1019 = vsub.f32 %v438, %v819
    %v1020 = vsub.f32 %v445, %v826
    %v1021 = vsub.f32 %v452, %v833
    %v1022 = vsub.f32 %v459, %v840
    %v1023 = vsub.f32 %v466, %v847
    %v1024 = vsub.f32 %v473, %v854
    %v1025 = vsub.f32 %v480, %v861
    %v1026 = vsub.f32 %v487, %v868
    %v1027 = vsub.f32 %v494, %v875
    %v1028 = vsub.f32 %v501, %v882
    %v1029 = vsub.f32 %v508, %v889
    %v1030 = vsub.f32 %v515, %v896
    %v1031 = vsub.f32 %v522, %v903
    %v1032 = vsub.f32 %v529, %v910
    %v1033 = vsub.f32 %v536, %v917
    %v1034 = vsub.f32 %v543, %v924
    %v1035 = vsub.f32 %v550, %v931
    %v1036 = vsub.f32 %v557, %v938
    %v1037 = vsub.f32 %v564, %v945
    %v1038 = vsub.f32 %v571, %v952
    %v1039 = vsub.f32 %v578, %v959
    %v1040 = vsub.f32 %v585, %v966
    %v1041 = vsub.f32 %v592, %v973
    %v1042 = vsub.f32 %v599, %v980
    %v1043 = vsub.f32 %v606, %v987
    %v1044 = vsub.f32 %v613, %v994
    %v1045 = vsub.f32 %v620, %v1001
    %v1046 = vsub.f32 %v627, %v1008
    %v1047 = vsub.f32 0.0, %v1009
    %v1048 = vsub.f32 0.0, %v1010
    %v1049 = vsub.f32 0.0, %v1011
    %v1050 = vsub.f32 0.0, %v1012
    %v1051 = vsub.f32 0.0, %v1013
    %v1052 = vsub.f32 0.0, %v1014
    %v1053 = vsub.f32 0.0, %v1015
    %v1054 = vsub.f32 0.0, %v1016
    %v1055 = vsub.f32 0.0, %v1017
    %v1056 = vsub.f32 0.0, %v1018
    %v1057 = vsub.f32 0.0, %v1019
    %v1058 = vsub.f32 0.0, %v1020
    %v1059 = vsub.f32 0.0, %v1021
    %v1060 = vsub.f32 0.0, %v1022
    %v1061 = vsub.f32 0.0, %v1023
    %v1062 = vsub.f32 0.0, %v1024
    %v1063 = vsub.f32 0.0, %v1025
    %v1064 = vsub.f32 0.0, %v1026
    %v1065 = vsub.f32 0.0, %v1027
    %v1066 = vsub.f32 0.0, %v1028
    %v1067 = vsub.f32 0.0, %v1029
    %v1068 = vsub.f32 0.0, %v1030
    %v1069 = vsub.f32 0.0, %v1031
    %v1070 = vsub.f32 0.0, %v1032
    %v1071 = vsub.f32 0.0, %v1033
    %v1072 = vsub.f32 0.0, %v1034
    %v1073 = vsub.f32 0.0, %v1035
    %v1074 = vsub.f32 0.0, %v1036
    %v1075 = vsub.f32 0.0, %v1037
    %v1076 = vsub.f32 0.0, %v1038
    %v1077 = vsub.f32 0.0, %v1039
    %v1078 = vsub.f32 0.0, %v1040
    %v1079 = vsub.f32 0.0, %v1041
    %v1080 = vsub.f32 0.0, %v1042
    %v1081 = vsub.f32 0.0, %v1043
    %v1082 = vsub.f32 0.0, %v1044
    %v1083 = vsub.f32 0.0, %v1045
    %v1084 = vsub.f32 0.0, %v1046
    %v1085 = vmul.f32 %v1047, 1.442695
    %v1086 = vpow.pop %v1085
    %v1087 = vmul.f32 %v1048, 1.442695
    %v1088 = vpow.pop %v1087
    %v1089 = vmul.f32 %v1049, 1.442695
    %v1090 = vpow.pop %v1089
    %v1091 = vmul.f32 %v1050, 1.442695
    %v1092 = vpow.pop %v1091
    %v1093 = vmul.f32 %v1051, 1.442695
    %v1094 = vpow.pop %v1093
    %v1095 = vmul.f32 %v1052, 1.442695
    %v1096 = vpow.pop %v1095
    %v1097 = vmul.f32 %v1053, 1.442695
    %v1098 = vpow.pop %v1097
    %v1099 = vmul.f32 %v1054, 1.442695
    %v1100 = vpow.pop %v1099
    %v1101 = vmul.f32 %v1055, 1.442695
    %v1102 = vpow.pop %v1101
    %v1103 = vmul.f32 %v1056, 1.442695
    %v1104 = vpow.pop %v1103
    %v1105 = vmul.f32 %v1057, 1.442695
    %v1106 = vpow.pop %v1105
    %v1107 = vmul.f32 %v1058, 1.442695
    %v1108 = vpow.pop %v1107
    %v1109 = vmul.f32 %v1059, 1.442695
    %v1110 = vpow.pop %v1109
    %v1111 = vmul.f32 %v1060, 1.442695
    %v1112 = vpow.pop %v1111
    %v1113 = vmul.f32 %v1061, 1.442695
    %v1114 = vpow.pop %v1113
    %v1115 = vmul.f32 %v1062, 1.442695
    %v1116 = vpow.pop %v1115
    %v1117 = vmul.f32 %v1063, 1.442695
    %v1118 = vpow.pop %v1117
    %v1119 = vmul.f32 %v1064, 1.442695
    %v1120 = vpow.pop %v1119
    %v1121 = vmul.f32 %v1065, 1.442695
    %v1122 = vpow.pop %v1121
    %v1123 = vmul.f32 %v1066, 1.442695
    %v1124 = vpow.pop %v1123
    %v1125 = vmul.f32 %v1067, 1.442695
    %v1126 = vpow.pop %v1125
    %v1127 = vmul.f32 %v1068, 1.442695
    %v1128 = vpow.pop %v1127
    %v1129 = vmul.f32 %v1069, 1.442695
    %v1130 = vpow.pop %v1129
    %v1131 = vmul.f32 %v1070, 1.442695
    %v1132 = vpow.pop %v1131
    %v1133 = vmul.f32 %v1071, 1.442695
    %v1134 = vpow.pop %v1133
    %v1135 = vmul.f32 %v1072, 1.442695
    %v1136 = vpow.pop %v1135
    %v1137 = vmul.f32 %v1073, 1.442695
    %v1138 = vpow.pop %v1137
    %v1139 = vmul.f32 %v1074, 1.442695
    %v1140 = vpow.pop %v1139
    %v1141 = vmul.f32 %v1075, 1.442695
    %v1142 = vpow.pop %v1141
    %v1143 = vmul.f32 %v1076, 1.442695
    %v1144 = vpow.pop %v1143
    %v1145 = vmul.f32 %v1077, 1.442695
    %v1146 = vpow.pop %v1145
    %v1147 = vmul.f32 %v1078, 1.442695
    %v1148 = vpow.pop %v1147
    %v1149 = vmul.f32 %v1079, 1.442695
    %v1150 = vpow.pop %v1149
    %v1151 = vmul.f32 %v1080, 1.442695
    %v1152 = vpow.pop %v1151
    %v1153 = vmul.f32 %v1081, 1.442695
    %v1154 = vpow.pop %v1153
    %v1155 = vmul.f32 %v1082, 1.442695
    %v1156 = vpow.pop %v1155
    %v1157 = vmul.f32 %v1083, 1.442695
    %v1158 = vpow.pop %v1157
    %v1159 = vmul.f32 %v1084, 1.442695
    %v1160 = vpow.pop %v1159
    %v1161 = vadd.f32 %v1086, 1.0
    %v1162 = vadd.f32 %v1088, 1.0
    %v1163 = vadd.f32 %v1090, 1.0
    %v1164 = vadd.f32 %v1092, 1.0
    %v1165 = vadd.f32 %v1094, 1.0
    %v1166 = vadd.f32 %v1096, 1.0
    %v1167 = vadd.f32 %v1098, 1.0
    %v1168 = vadd.f32 %v1100, 1.0
    %v1169 = vadd.f32 %v1102, 1.0
    %v1170 = vadd.f32 %v1104, 1.0
    %v1171 = vadd.f32 %v1106, 1.0
    %v1172 = vadd.f32 %v1108, 1.0
    %v1173 = vadd.f32 %v1110, 1.0
    %v1174 = vadd.f32 %v1112, 1.0
    %v1175 = vadd.f32 %v1114, 1.0
    %v1176 = vadd.f32 %v1116, 1.0
    %v1177 = vadd.f32 %v1118, 1.0
    %v1178 = vadd.f32 %v1120, 1.0
    %v1179 = vadd.f32 %v1122, 1.0
    %v1180 = vadd.f32 %v1124, 1.0
    %v1181 = vadd.f32 %v1126, 1.0
    %v1182 = vadd.f32 %v1128, 1.0
    %v1183 = vadd.f32 %v1130, 1.0
    %v1184 = vadd.f32 %v1132, 1.0
    %v1185 = vadd.f32 %v1134, 1.0
    %v1186 = vadd.f32 %v1136, 1.0
    %v1187 = vadd.f32 %v1138, 1.0
    %v1188 = vadd.f32 %v1140, 1.0
    %v1189 = vadd.f32 %v1142, 1.0
    %v1190 = vadd.f32 %v1144, 1.0
    %v1191 = vadd.f32 %v1146, 1.0
    %v1192 = vadd.f32 %v1148, 1.0
    %v1193 = vadd.f32 %v1150, 1.0
    %v1194 = vadd.f32 %v1152, 1.0
    %v1195 = vadd.f32 %v1154, 1.0
    %v1196 = vadd.f32 %v1156, 1.0
    %v1197 = vadd.f32 %v1158, 1.0
    %v1198 = vadd.f32 %v1160, 1.0
    %v1199 = vrcp.pop %v1161
    %v1200 = vmul.f32 1.0, %v1199
    %v1201 = vrcp.pop %v1162
    %v1202 = vmul.f32 1.0, %v1201
    %v1203 = vrcp.pop %v1163
    %v1204 = vmul.f32 1.0, %v1203
    %v1205 = vrcp.pop %v1164
    %v1206 = vmul.f32 1.0, %v1205
    %v1207 = vrcp.pop %v1165
    %v1208 = vmul.f32 1.0, %v1207
    %v1209 = vrcp.pop %v1166
    %v1210 = vmul.f32 1.0, %v1209
    %v1211 = vrcp.pop %v1167
    %v1212 = vmul.f32 1.0, %v1211
    %v1213 = vrcp.pop %v1168
    %v1214 = vmul.f32 1.0, %v1213
    %v1215 = vrcp.pop %v1169
    %v1216 = vmul.f32 1.0, %v1215
    %v1217 = vrcp.pop %v1170
    %v1218 = vmul.f32 1.0, %v1217
    %v1219 = vrcp.pop %v1171
    %v1220 = vmul.f32 1.0, %v1219
    %v1221 = vrcp.pop %v1172
    %v1222 = vmul.f32 1.0, %v1221
    %v1223 = vrcp.pop %v1173
    %v1224 = vmul.f32 1.0, %v1223
    %v1225 = vrcp.pop %v1174
    %v1226 = vmul.f32 1.0, %v1225
    %v1227 = vrcp.pop %v1175
    %v1228 = vmul.f32 1.0, %v1227
    %v1229 = vrcp.pop %v1176
    %v1230 = vmul.f32 1.0, %v1229
    %v1231 = vrcp.pop %v1177
    %v1232 = vmul.f32 1.0, %v1231
    %v1233 = vrcp.pop %v1178
    %v1234 = vmul.f32 1.0, %v1233
    %v1235 = vrcp.pop %v1179
    %v1236 = vmul.f32 1.0, %v1235
    %v1237 = vrcp.pop %v1180
    %v1238 = vmul.f32 1.0, %v1237
    %v1239 = vrcp.pop %v1181
    %v1240 = vmul.f32 1.0, %v1239
    %v1241 = vrcp.pop %v1182
    %v1242 = vmul.f32 1.0, %v1241
    %v1243 = vrcp.pop %v1183
    %v1244 = vmul.f32 1.0, %v1243
    %v1245 = vrcp.pop %v1184
    %v1246 = vmul.f32 1.0, %v1245
    %v1247 = vrcp.pop %v1185
    %v1248 = vmul.f32 1.0, %v1247
    %v1249 = vrcp.pop %v1186
    %v1250 = vmul.f32 1.0, %v1249
    %v1251 = vrcp.pop %v1187
    %v1252 = vmul.f32 1.0, %v1251
    %v1253 = vrcp.pop %v1188
    %v1254 = vmul.f32 1.0, %v1253
    %v1255 = vrcp.pop %v1189
    %v1256 = vmul.f32 1.0, %v1255
    %v1257 = vrcp.pop %v1190
    %v1258 = vmul.f32 1.0, %v1257
    %v1259 = vrcp.pop %v1191
    %v1260 = vmul.f32 1.0, %v1259
    %v1261 = vrcp.pop %v1192
    %v1262 = vmul.f32 1.0, %v1261
    %v1263 = vrcp.pop %v1193
    %v1264 = vmul.f32 1.0, %v1263
    %v1265 = vrcp.pop %v1194
    %v1266 = vmul.f32 1.0, %v1265
    %v1267 = vrcp.pop %v1195
    %v1268 = vmul.f32 1.0, %v1267
    %v1269 = vrcp.pop %v1196
    %v1270 = vmul.f32 1.0, %v1269
    %v1271 = vrcp.pop %v1197
    %v1272 = vmul.f32 1.0, %v1271
    %v1273 = vrcp.pop %v1198
    %v1274 = vmul.f32 1.0, %v1273
    %v1275 = vmul.f32 %v1200, 2.0
    %v1276 = vmul.f32 %v1202, 2.0
    %v1277 = vmul.f32 %v1204, 2.0
    %v1278 = vmul.f32 %v1206, 2.0
    %v1279 = vmul.f32 %v1208, 2.0
    %v1280 = vmul.f32 %v1210, 2.0
    %v1281 = vmul.f32 %v1212, 2.0
    %v1282 = vmul.f32 %v1214, 2.0
    %v1283 = vmul.f32 %v1216, 2.0
    %v1284 = vmul.f32 %v1218, 2.0
    %v1285 = vmul.f32 %v1220, 2.0
    %v1286 = vmul.f32 %v1222, 2.0
    %v1287 = vmul.f32 %v1224, 2.0
    %v1288 = vmul.f32 %v1226, 2.0
    %v1289 = vmul.f32 %v1228, 2.0
    %v1290 = vmul.f32 %v1230, 2.0
    %v1291 = vmul.f32 %v1232, 2.0
    %v1292 = vmul.f32 %v1234, 2.0
    %v1293 = vmul.f32 %v1236, 2.0
    %v1294 = vmul.f32 %v1238, 2.0
    %v1295 = vmul.f32 %v1240, 2.0
    %v1296 = vmul.f32 %v1242, 2.0
    %v1297 = vmul.f32 %v1244, 2.0
    %v1298 = vmul.f32 %v1246, 2.0
    %v1299 = vmul.f32 %v1248, 2.0
    %v1300 = vmul.f32 %v1250, 2.0
    %v1301 = vmul.f32 %v1252, 2.0
    %v1302 = vmul.f32 %v1254, 2.0
    %v1303 = vmul.f32 %v1256, 2.0
    %v1304 = vmul.f32 %v1258, 2.0
    %v1305 = vmul.f32 %v1260, 2.0
    %v1306 = vmul.f32 %v1262, 2.0
    %v1307 = vmul.f32 %v1264, 2.0
    %v1308 = vmul.f32 %v1266, 2.0
    %v1309 = vmul.f32 %v1268, 2.0
    %v1310 = vmul.f32 %v1270, 2.0
    %v1311 = vmul.f32 %v1272, 2.0
    %v1312 = vmul.f32 %v1274, 2.0
    %v1313 = vmul.f32 %v1275, %v1200
    %v1314 = vmul.f32 %v1276, %v1202
    %v1315 = vmul.f32 %v1277, %v1204
    %v1316 = vmul.f32 %v1278, %v1206
    %v1317 = vmul.f32 %v1279, %v1208
    %v1318 = vmul.f32 %v1280, %v1210
    %v1319 = vmul.f32 %v1281, %v1212
    %v1320 = vmul.f32 %v1282, %v1214
    %v1321 = vmul.f32 %v1283, %v1216
    %v1322 = vmul.f32 %v1284, %v1218
    %v1323 = vmul.f32 %v1285, %v1220
    %v1324 = vmul.f32 %v1286, %v1222
    %v1325 = vmul.f32 %v1287, %v1224
    %v1326 = vmul.f32 %v1288, %v1226
    %v1327 = vmul.f32 %v1289, %v1228
    %v1328 = vmul.f32 %v1290, %v1230
    %v1329 = vmul.f32 %v1291, %v1232
    %v1330 = vmul.f32 %v1292, %v1234
    %v1331 = vmul.f32 %v1293, %v1236
    %v1332 = vmul.f32 %v1294, %v1238
    %v1333 = vmul.f32 %v1295, %v1240
    %v1334 = vmul.f32 %v1296, %v1242
    %v1335 = vmul.f32 %v1297, %v1244
    %v1336 = vmul.f32 %v1298, %v1246
    %v1337 = vmul.f32 %v1299, %v1248
    %v1338 = vmul.f32 %v1300, %v1250
    %v1339 = vmul.f32 %v1301, %v1252
    %v1340 = vmul.f32 %v1302, %v1254
    %v1341 = vmul.f32 %v1303, %v1256
    %v1342 = vmul.f32 %v1304, %v1258
    %v1343 = vmul.f32 %v1305, %v1260
    %v1344 = vmul.f32 %v1306, %v1262
    %v1345 = vmul.f32 %v1307, %v1264
    %v1346 = vmul.f32 %v1308, %v1266
    %v1347 = vmul.f32 %v1309, %v1268
    %v1348 = vmul.f32 %v1310, %v1270
    %v1349 = vmul.f32 %v1311, %v1272
    %v1350 = vmul.f32 %v1312, %v1274
    %v1351 = vadd.f32 %v1313, %v1314
    %v1352 = vadd.f32 %v1351, %v1315
    %v1353 = vadd.f32 %v1352, %v1316
    %v1354 = vadd.f32 %v1353, %v1317
    %v1355 = vadd.f32 %v1354, %v1318
    %v1356 = vadd.f32 %v1355, %v1319
    %v1357 = vadd.f32 %v1356, %v1320
    %v1358 = vadd.f32 %v1357, %v1321
    %v1359 = vadd.f32 %v1358, %v1322
    %v1360 = vadd.f32 %v1359, %v1323
    %v1361 = vadd.f32 %v1360, %v1324
    %v1362 = vadd.f32 %v1361, %v1325
    %v1363 = vadd.f32 %v1362, %v1326
    %v1364 = vadd.f32 %v1363, %v1327
    %v1365 = vadd.f32 %v1364, %v1328
    %v1366 = vadd.f32 %v1365, %v1329
    %v1367 = vadd.f32 %v1366, %v1330
    %v1368 = vadd.f32 %v1367, %v1331
    %v1369 = vadd.f32 %v1368, %v1332
    %v1370 = vadd.f32 %v1369, %v1333
    %v1371 = vadd.f32 %v1370, %v1334
    %v1372 = vadd.f32 %v1371, %v1335
    %v1373 = vadd.f32 %v1372, %v1336
    %v1374 = vadd.f32 %v1373, %v1337
    %v1375 = vadd.f32 %v1374, %v1338
    %v1376 = vadd.f32 %v1375, %v1339
    %v1377 = vadd.f32 %v1376, %v1340
    %v1378 = vadd.f32 %v1377, %v1341
    %v1379 = vadd.f32 %v1378, %v1342
    %v1380 = vadd.f32 %v1379, %v1343
    %v1381 = vadd.f32 %v1380, %v1344
    %v1382 = vadd.f32 %v1381, %v1345
    %v1383 = vadd.f32 %v1382, %v1346
    %v1384 = vadd.f32 %v1383, %v1347
    %v1385 = vadd.f32 %v1384, %v1348
    %v1386 = vadd.f32 %v1385, %v1349
    %v1387 = vsel %vm358, %v1350, 0.0
    %v1388 = vadd.f32 %v1386, %v1387
    %v1389 = vrot.slane %v1388, 4
    %v1390 = vadd.f32 %v1388, %v1389
    %v1391 = vrot.slane %v1390, 2
    %v1392 = vadd.f32 %v1390, %v1391
    %v1393 = vrot.slane %v1392, 1
    %v1394 = vadd.f32 %v1392, %v1393
    %vm1395 = vcmask 0
    %1396 = vst.msk [vmem:[#allocation8] sm:$0x1] %vm1395, %v1394
    // Predicated region
    $region26: #{tpu_custom_call.1} parent=1 // pred_check
      _
    $region27: #{tpu_custom_call.1} parent=1 // pred_check_branch
      %1398 = sbr.rel (0) target = $region29
    $region28: #{tpu_custom_call.1} parent=1 // pred_region
      %s1400 = ssub.s32 16, 16
      %1401 = vsyncadd [#allocation4], %s1400
      %s1403 = sshll.u32 [#allocation8], 4
      %s1404 = int_to_ptr.vmem [resolvable:$true] %s1403
      %1406 = dma.vmem_to_hbm [thread:$0]  %s1404, 16, %s3, [#allocation4]
    $region29: #{tpu_custom_call.1} parent=1 // pred_fallthru
      _
    // Predicated region
    $region30: #{tpu_custom_call.1} parent=1 // pred_check
      _
    $region31: #{tpu_custom_call.1} parent=1 // pred_check_branch
      %1408 = sbr.rel (0) target = $region33
    $region32: #{tpu_custom_call.1} parent=1 // pred_region
      %1409 = dma.done [#allocation4], 16
    $region33: #{tpu_custom_call.1} parent=1 // pred_fallthru
      _
    %1410 = vsyncpa [#allocation3], 1
    %1411 = vsyncpa [#allocation6], 1
    %1412 = vsyncpa [#allocation4], 1

</llo_original>
